<compile_context>
chip_gen: v7x
topology: tpu7x:2x2x1
jax: 0.10.0
libtpu: 0.0.40
codegen_flags: <defaults>
</compile_context>

<pallas_src>
import functools
import math

import jax
import jax.numpy as jnp
from jax.experimental import pallas as pl
from jax.experimental.pallas import tpu as pltpu


LANES = 128
MAX_TILE_ROWS = 2048            # 2048 * 128 * 4B = 1 MiB per f32 stream
SMALL_FAST_PATH_BYTES = 256 * 1024


def _build_pe(d_model: int, max_seq_length: int, dtype=jnp.float32):
    """Same math as the torch __init__ (buffer setup, plain JAX glue)."""
    position = jnp.arange(max_seq_length, dtype=jnp.float32)[:, None]          # (L, 1)
    div_term = jnp.exp(
        jnp.arange(0, d_model, 2, dtype=jnp.float32) * (-math.log(10000.0) / d_model)
    )                                                                           # (D/2,)
    pe = jnp.zeros((max_seq_length, 1, d_model), jnp.float32)
    pe = pe.at[:, 0, 0::2].set(jnp.sin(position * div_term))
    pe = pe.at[:, 0, 1::2].set(jnp.cos(position * div_term))
    return pe.astype(dtype)


# ----------------------------- kernels ---------------------------------------
# All kernels operate on lane-dense (tile_rows, 128) blocks of the flattened
# (S*B*D,) array, so every vreg and every store is fully packed.


def _pe_add_kernel(x_ref, pe_ref, o_ref):
    o_ref[...] = (x_ref[...] + pe_ref[...]).astype(o_ref.dtype)


def _pe_add_dropout_prng_kernel(seed_ref, x_ref, pe_ref, o_ref, *, threshold, scale):
    # Per-tile seed so grid steps don't reuse the same random stream.
    pltpu.prng_seed(seed_ref[0] + pl.program_id(0))
    bits = pltpu.prng_random_bits(x_ref.shape)
    if bits.dtype != jnp.int32:
        bits = pltpu.bitcast(bits, jnp.int32)
    # Strip the sign bit -> uniform int on [0, 2^31); keep iff r >= p * 2^31.
    r = jnp.bitwise_and(bits, jnp.int32(0x7FFFFFFF))
    y = x_ref[...] + pe_ref[...]
    keep = (r >= jnp.int32(threshold)).astype(y.dtype)
    o_ref[...] = (y * (keep * jnp.asarray(scale, y.dtype))).astype(o_ref.dtype)


def _pe_add_dropout_streamed_kernel(x_ref, pe_ref, r_ref, o_ref, *, threshold, scale):
    # Fallback path (interpret mode / CPU): random ints streamed from HBM.
    y = x_ref[...] + pe_ref[...]
    keep = (r_ref[...] >= jnp.int32(threshold)).astype(y.dtype)
    o_ref[...] = (y * (keep * jnp.asarray(scale, y.dtype))).astype(o_ref.dtype)


# ----------------------------- pallas_call wrappers ---------------------------


def _pallas_pe_add(x2, pe2, tile_rows, out_dtype):
    rows, lanes = x2.shape
    block = pl.BlockSpec((tile_rows, lanes), lambda i: (i, 0))
    return pl.pallas_call(
        _pe_add_kernel,
        out_shape=jax.ShapeDtypeStruct((rows, lanes), out_dtype),
        grid=(pl.cdiv(rows, tile_rows),),
        in_specs=[block, block],
        out_specs=block,
        compiler_params=pltpu.CompilerParams(dimension_semantics=("parallel",)),
    )(x2, pe2)


def _pallas_pe_dropout_prng(x2, pe2, seed, p, tile_rows, out_dtype):
    rows, lanes = x2.shape
    block = pl.BlockSpec((tile_rows, lanes), lambda i, seed_ref: (i, 0))
    kernel = functools.partial(
        _pe_add_dropout_prng_kernel,
        threshold=int(round(p * float(1 << 31))),
        scale=float(1.0 / (1.0 - p)),
    )
    return pl.pallas_call(
        kernel,
        out_shape=jax.ShapeDtypeStruct((rows, lanes), out_dtype),
        grid_spec=pltpu.PrefetchScalarGridSpec(
            num_scalar_prefetch=1,
            grid=(pl.cdiv(rows, tile_rows),),
            in_specs=[block, block],
            out_specs=block,
        ),
        compiler_params=pltpu.CompilerParams(dimension_semantics=("parallel",)),
    )(seed, x2, pe2)


def _pallas_pe_dropout_streamed(x2, pe2, r2, p, tile_rows, out_dtype):
    rows, lanes = x2.shape
    block = pl.BlockSpec((tile_rows, lanes), lambda i: (i, 0))
    kernel = functools.partial(
        _pe_add_dropout_streamed_kernel,
        threshold=int(round(p * float(1 << 31))),
        scale=float(1.0 / (1.0 - p)),
    )
    return pl.pallas_call(
        kernel,
        out_shape=jax.ShapeDtypeStruct((rows, lanes), out_dtype),
        grid=(pl.cdiv(rows, tile_rows),),
        in_specs=[block, block, block],
        out_specs=block,
        compiler_params=pltpu.CompilerParams(dimension_semantics=("parallel",)),
    )(x2, pe2, r2)


# ----------------------------- module -----------------------------------------


class PositionalEncoding:
    """JAX/Pallas port of the torch PositionalEncoding forward pass."""

    def __init__(self, d_model: int, max_seq_length: int = 5000, dropout: float = 0.1):
        assert 0.0 <= dropout < 1.0
        self.d_model = d_model
        self.max_seq_length = max_seq_length
        self.p = float(dropout)
        self.pe = _build_pe(d_model, max_seq_length)          # (L, 1, D) float32
        self._slab_cache = {}

    def _pe_slab(self, S, B, dtype, rows, pad):
        """Batch-broadcast PE as a lane-dense (rows, 128) slab, cached per shape."""
        key = (S, B, jnp.dtype(dtype).name, rows, pad)
        slab = self._slab_cache.get(key)
        if slab is None:
            pe = jnp.broadcast_to(self.pe[:S], (S, B, self.d_model)).astype(dtype)
            flat = pe.reshape(-1)
            if pad:
                flat = jnp.pad(flat, (0, pad))
            slab = jax.block_until_ready(flat.reshape(rows, LANES))
            # TODO(synk): when B*D is a power of two, generate pe in-kernel from
            # broadcasted_iota + sin/cos to drop this input stream entirely.
            self._slab_cache[key] = slab
        return slab

    def __call__(self, x, *, key=None, training: bool = True, use_pallas=None):
        S, B, D = x.shape
        assert D == self.d_model and S <= self.max_seq_length
        p = self.p
        use_dropout = training and p > 0.0
        if use_dropout:
            assert key is not None, "training=True requires a PRNG key"

        n = S * B * D
        if use_pallas is None:
            use_pallas = n * jnp.dtype(x.dtype).itemsize >= SMALL_FAST_PATH_BYTES

        if not use_pallas:
            # Tiny-shape / eval fast path: let XLA fuse into neighbouring ops;
            # at these sizes pallas_call + DMA setup dominate the math.
            y = x + self.pe[:S].astype(x.dtype)
            if use_dropout:
                keep = jax.random.bernoulli(key, 1.0 - p, y.shape)
                y = jnp.where(keep, y / (1.0 - p), 0.0).astype(x.dtype)
            return y

        pad = (-n) % LANES                    # non-zero only if numel % 128 != 0
        rows = (n + pad) // LANES
        tile_rows = rows if rows <= MAX_TILE_ROWS else MAX_TILE_ROWS

        flat = x.reshape(-1)
        if pad:
            flat = jnp.pad(flat, (0, pad))
        x2 = flat.reshape(rows, LANES)
        pe2 = self._pe_slab(S, B, x.dtype, rows, pad)

        if use_dropout:
            seed = jax.random.randint(
                key, (1,), 0, jnp.iinfo(jnp.int32).max, dtype=jnp.int32
            )
            try:
                out2 = _pallas_pe_dropout_prng(x2, pe2, seed, p, tile_rows, x.dtype)
                if hasattr(out2, "block_until_ready"):
                    out2.block_until_ready()
            except Exception:
                # Interpret-mode / CPU fallback: hardware PRNG not available,
                # stream pre-generated random ints instead.
                r2 = jax.random.randint(key, x2.shape, 0, 0x7FFFFFFF, dtype=jnp.int32)
                out2 = _pallas_pe_dropout_streamed(x2, pe2, r2, p, tile_rows, x.dtype)
        else:
            out2 = _pallas_pe_add(x2, pe2, tile_rows, x.dtype)

        if pad:
            out2 = out2.reshape(-1)[:n]
        return out2.reshape(S, B, D)


# ----------------------------- demo / self-test --------------------------------


if __name__ == "__main__":
    root = jax.random.PRNGKey(0)
    kx, kd = jax.random.split(root)

    S, B, D = 8, 2, 32
    module = PositionalEncoding(d_model=D, max_seq_length=64, dropout=0.1)
    x = jax.random.normal(kx, (S, B, D), dtype=jnp.float32)
    ref = x + module.pe[:S]

    # Eval mode through the Pallas kernel (dropout disabled -> exact add).
    out_eval = module(x, training=False, use_pallas=True)
    out_eval = jax.block_until_ready(out_eval)
    assert out_eval.shape == x.shape and out_eval.dtype == x.dtype
    assert jnp.allclose(out_eval, ref, atol=1e-6, rtol=1e-6)

    # Train mode through the Pallas kernel (in-kernel PRNG dropout): every
    # element must be either 0 (dropped) or (x + pe) / (1 - p) (kept).
    out_train = module(x, key=kd, training=True, use_pallas=True)
    out_train = jax.block_until_ready(out_train)
    assert out_train.shape == x.shape and out_train.dtype == x.dtype
    kept_val = ref / (1.0 - module.p)
    is_zero = jnp.isclose(out_train, 0.0, atol=1e-6)
    is_kept = jnp.isclose(out_train, kept_val, atol=1e-5, rtol=1e-5)
    assert bool(jnp.all(is_zero | is_kept))
    drop_frac = float(jnp.mean(is_zero))
    assert 0.0 <= drop_frac < 0.5      # loose sanity check on the mask rate

    # Small-shape fused fallback agrees with the kernel in eval mode.
    out_fast = jax.block_until_ready(module(x, training=False, use_pallas=False))
    assert jnp.allclose(out_fast, out_eval, atol=1e-6, rtol=1e-6)

    print("KERNEL_OK")
</pallas_src>

<mosaic_0001>
module attributes {stable_mosaic.version = 11 : i64} {
  func.func @_pe_add_kernel(%arg0: i32, %arg1: memref<4x128xf32, #tpu.memory_space<vmem>>, %arg2: memref<4x128xf32, #tpu.memory_space<vmem>>, %arg3: memref<4x128xf32, #tpu.memory_space<vmem>>) attributes {dimension_semantics = [#tpu.dimension_semantics<parallel>], iteration_bounds = array<i64: 1>, scalar_prefetch = 0 : i64, scratch_operands = 0 : i64, tpu.core_type = #tpu.core_type<tc>, window_params = [{transform_indices = @transform_0, window_bounds = array<i64: 4, 128>}, {transform_indices = @transform_1, window_bounds = array<i64: 4, 128>}, {transform_indices = @transform_2, window_bounds = array<i64: 4, 128>}]} {
    %c0 = arith.constant 0 : index
    %c0_0 = arith.constant 0 : index
    %0 = vector.load %arg1[%c0, %c0_0] : memref<4x128xf32, #tpu.memory_space<vmem>>, vector<4x128xf32>
    %c0_1 = arith.constant 0 : index
    %c0_2 = arith.constant 0 : index
    %1 = vector.load %arg2[%c0_1, %c0_2] : memref<4x128xf32, #tpu.memory_space<vmem>>, vector<4x128xf32>
    %2 = arith.addf %0, %1 : vector<4x128xf32>
    %c0_3 = arith.constant 0 : index
    %c0_4 = arith.constant 0 : index
    %3 = vector.load %arg3[%c0_3, %c0_4] : memref<4x128xf32, #tpu.memory_space<vmem>>, vector<4x128xf32>
    tpu.vector_store %arg3[%c0_3, %c0_4], %2 {strides = array<i32>} : memref<4x128xf32, #tpu.memory_space<vmem>>, vector<4x128xf32>,
    return
  }
  func.func @transform_0(%arg0: i32) -> (i32, i32) {
    %c0_i32 = arith.constant 0 : i32
    %c0_i32_0 = arith.constant 0 : i32
    return %arg0, %c0_i32 : i32, i32
  }
  func.func @transform_1(%arg0: i32) -> (i32, i32) {
    %c0_i32 = arith.constant 0 : i32
    %c0_i32_0 = arith.constant 0 : i32
    return %arg0, %c0_i32 : i32, i32
  }
  func.func @transform_2(%arg0: i32) -> (i32, i32) {
    %c0_i32 = arith.constant 0 : i32
    %c0_i32_0 = arith.constant 0 : i32
    return %arg0, %c0_i32 : i32, i32
  }
}

</mosaic_0001>

<llo_original>
// kernel: tpu_custom_call.1
$region0: #{tpu_custom_call.1}
  #allocation0 [shape = 'u32[]', space=smem, size = 0x4, offset = 0x4, fixed_abs, tag = 'smem constant byte address 0x4 - core index']
  #allocation1 [shape = 'u32[144,128]{1,0:T(1,128)}', space=vmem, size = 0x12000, scoped, tag = 'internal scratch']
  %s0 = inlined_call_operand.hbm [shape: f32[4,128], index: 0, kind: input, shape index: {}]
  %s1 = inlined_call_operand.hbm [shape: f32[4,128], index: 1, kind: input, shape index: {}]
  %s2 = inlined_call_operand.hbm [shape: f32[4,128], index: 2, kind: output, shape index: {}]
  %s3 = sld [smem:[#allocation0]]
  $region26: #{tpu_custom_call.1} parent=0
    _
  %s5 = ssub.s32 1, %s3
  %s6 = scalar_select 0, %s5, %s3
  $region1: #{tpu_custom_call.1} parent=0
    #allocation2 [shape = 'u8[2048]{0}', space=vmem, size = 0x800, scoped, tag = 'input window, operand 0, single buffered']
    #allocation3 [shape = 's32[1]{0}', space=sflag, size = 0x4, scoped, tag = 'scoped memory for tpu_custom_call.1']
    #allocation4 [shape = 's32[1]{0}', space=sflag, size = 0x4, scoped, tag = 'scoped memory for tpu_custom_call.1']
    #allocation5 [shape = 'u8[2048]{0}', space=vmem, size = 0x800, scoped, tag = 'input window, operand 1, single buffered']
    #allocation6 [shape = 's32[1]{0}', space=sflag, size = 0x4, scoped, tag = 'scoped memory for tpu_custom_call.1']
    #allocation7 [shape = 'u8[2048]{0}', space=vmem, size = 0x800, scoped, tag = 'output window, operand 0, single buffered']
    %7 = vsyncpa [#allocation3], 0
    %8 = vsyncpa [#allocation6], 0
    %9 = vsyncpa [#allocation4], 0
    // Predicated region
    $region2: #{tpu_custom_call.1} parent=1 // pred_check
      _
    $region3: #{tpu_custom_call.1} parent=1 // pred_check_branch
      %11 = sbr.rel (0) target = $region5
    $region4: #{tpu_custom_call.1} parent=1 // pred_region
      %s13 = ssub.s32 64, 64
      %14 = vsyncadd [#allocation3], %s13
      %s16 = sshll.u32 [#allocation2], 4
      %s17 = int_to_ptr.vmem [resolvable:$true] %s16
      %19 = dma.hbm_to_vmem [thread:$0]  %s0, 64, %s17, [#allocation3]
    $region5: #{tpu_custom_call.1} parent=1 // pred_fallthru
      _
    // Predicated region
    $region6: #{tpu_custom_call.1} parent=1 // pred_check
      _
    $region7: #{tpu_custom_call.1} parent=1 // pred_check_branch
      %21 = sbr.rel (0) target = $region9
    $region8: #{tpu_custom_call.1} parent=1 // pred_region
      %s23 = ssub.s32 64, 64
      %24 = vsyncadd [#allocation6], %s23
      %s26 = sshll.u32 [#allocation5], 4
      %s27 = int_to_ptr.vmem [resolvable:$true] %s26
      %29 = dma.hbm_to_vmem [thread:$0]  %s1, 64, %s27, [#allocation6]
    $region9: #{tpu_custom_call.1} parent=1 // pred_fallthru
      _
    // Predicated region
    $region10: #{tpu_custom_call.1} parent=1 // pred_check
      _
    $region11: #{tpu_custom_call.1} parent=1 // pred_check_branch
      %31 = sbr.rel (0) target = $region13
    $region12: #{tpu_custom_call.1} parent=1 // pred_region
      %32 = dma.done [#allocation3], 64
    $region13: #{tpu_custom_call.1} parent=1 // pred_fallthru
      _
    // Predicated region
    $region14: #{tpu_custom_call.1} parent=1 // pred_check
      _
    $region15: #{tpu_custom_call.1} parent=1 // pred_check_branch
      %34 = sbr.rel (0) target = $region17
    $region16: #{tpu_custom_call.1} parent=1 // pred_region
      %35 = dma.done [#allocation6], 64
    $region17: #{tpu_custom_call.1} parent=1 // pred_fallthru
      _
    %v36 = vld [vmem:[#allocation2] sm:$0xf]
    %v37 = vld [vmem:[#allocation5] sm:$0xf]
    %v38 = vadd.f32 %v36, %v37
    %39 = vst [vmem:[#allocation7] sm:$0xf] %v38
    // Predicated region
    $region18: #{tpu_custom_call.1} parent=1 // pred_check
      _
    $region19: #{tpu_custom_call.1} parent=1 // pred_check_branch
      %41 = sbr.rel (0) target = $region21
    $region20: #{tpu_custom_call.1} parent=1 // pred_region
      %s43 = ssub.s32 64, 64
      %44 = vsyncadd [#allocation4], %s43
      %s46 = sshll.u32 [#allocation7], 4
      %s47 = int_to_ptr.vmem [resolvable:$true] %s46
      %49 = dma.vmem_to_hbm [thread:$0]  %s47, 64, %s2, [#allocation4]
    $region21: #{tpu_custom_call.1} parent=1 // pred_fallthru
      _
    // Predicated region
    $region22: #{tpu_custom_call.1} parent=1 // pred_check
      _
    $region23: #{tpu_custom_call.1} parent=1 // pred_check_branch
      %51 = sbr.rel (0) target = $region25
    $region24: #{tpu_custom_call.1} parent=1 // pred_region
      %52 = dma.done [#allocation4], 64
    $region25: #{tpu_custom_call.1} parent=1 // pred_fallthru
      _
    %53 = vsyncpa [#allocation3], 1
    %54 = vsyncpa [#allocation6], 1
    %55 = vsyncpa [#allocation4], 1

</llo_original>
